<compile_context>
chip_gen: v7x
topology: tpu7x:2x2x1
jax: 0.10.0
libtpu: 0.0.40
codegen_flags: <defaults>
</compile_context>

<pallas_src>
import functools

import jax
import jax.numpy as jnp
from jax.experimental import pallas as pl
from jax.experimental.pallas import tpu as pltpu

F32 = jnp.float32
BIG = 1e30
Z_EPS = 1e-2
POINT_RADIUS = 0.01    # hardcoded in ModelDBIR.forward (render_point_cloud_pytorch3d)

UNPROJ_TILE = 8192     # max lane tile for the streaming unproject kernel
RENDER_TPTS = 512      # point (sublane) tile of the raster kernel
RENDER_TPIX = 512      # max pixel (lane) tile of the raster kernel


def _round_up(x, m):
    return (x + m - 1) // m * m


def _pick_pixel_tile(ppix, max_tile=RENDER_TPIX):
    """Pixel lane tile: multiple of 128, <= max_tile, >=2 tiles when possible (v7x)."""
    padded = _round_up(ppix, 128)
    if padded <= 128:
        return padded
    half = max(128, (padded // 2) // 128 * 128)
    return min(max_tile, half)


# ----------------------------------------------------------------------------
# Kernel 1: unproject all known RGB-D views to a world-space point cloud
#           (lane-dense: pixels on lanes, batched over views via the grid)
# ----------------------------------------------------------------------------
def unproject_kernel(cam_ref, xy_ref, depth_ref, fg_ref, pts_ref, valid_ref):
    # cam_ref (SMEM, (NK*16,)): [fx, fy, px, py, tx, ty, tz, R00..R22 row major]
    v = pl.program_id(0)
    base = v * 16
    fx, fy = cam_ref[base + 0], cam_ref[base + 1]
    px, py = cam_ref[base + 2], cam_ref[base + 3]
    tx, ty, tz = cam_ref[base + 4], cam_ref[base + 5], cam_ref[base + 6]
    r00, r01, r02 = cam_ref[base + 7], cam_ref[base + 8], cam_ref[base + 9]
    r10, r11, r12 = cam_ref[base + 10], cam_ref[base + 11], cam_ref[base + 12]
    r20, r21, r22 = cam_ref[base + 13], cam_ref[base + 14], cam_ref[base + 15]

    inv_fx = 1.0 / fx          # scalar divides, once per grid step
    inv_fy = 1.0 / fy

    xy = xy_ref[...]           # (2, TP)  NDC pixel centers, lane-dense
    z = depth_ref[0]           # (1, TP)
    fg = fg_ref[0]             # (1, TP)

    # NDC + depth -> camera(view) coords
    xc = (xy[0:1, :] - px) * z * inv_fx
    yc = (xy[1:2, :] - py) * z * inv_fy

    # view -> world :  X_world = (X_view - T) @ R^T
    dx, dy, dz = xc - tx, yc - ty, z - tz
    xw = dx * r00 + dy * r01 + dz * r02
    yw = dx * r10 + dy * r11 + dz * r12
    zw = dx * r20 + dy * r21 + dz * r22

    pts_ref[...] = jnp.concatenate([xw, yw, zw], axis=0)       # (3, TP)
    # point kept iff depth > 0 and foreground prob > 0.5 (mask_fg threshold)
    valid_ref[...] = ((z > 0.0) & (fg > 0.5)).astype(F32)      # (1, TP)


def unproject_points(cams_flat, xy, depth, fg, tp):
    """cams (NK*16,); xy (2,PP); depth/fg (NK,1,PP) -> pts (3,NK*PP), valid (1,NK*PP)."""
    nk, _, pp = depth.shape
    nblk = pp // tp
    return pl.pallas_call(
        unproject_kernel,
        out_shape=(jax.ShapeDtypeStruct((3, nk * pp), F32),
                   jax.ShapeDtypeStruct((1, nk * pp), F32)),
        grid_spec=pltpu.PrefetchScalarGridSpec(
            num_scalar_prefetch=0,
            grid=(nk, nblk),
            in_specs=[pl.BlockSpec(memory_space=pltpu.MemorySpace.SMEM),
                      pl.BlockSpec((2, tp), lambda v, p: (0, p)),
                      pl.BlockSpec((1, 1, tp), lambda v, p: (v, 0, p)),
                      pl.BlockSpec((1, 1, tp), lambda v, p: (v, 0, p))],
            out_specs=(pl.BlockSpec((3, tp), lambda v, p: (0, v * nblk + p)),
                       pl.BlockSpec((1, tp), lambda v, p: (0, v * nblk + p)))),
        compiler_params=pltpu.CompilerParams(
            dimension_semantics=("parallel", "parallel")),
    )(cams_flat, xy, depth, fg)


# ----------------------------------------------------------------------------
# Per-target-camera projection prologue (tiny O(NPTS) work, hoisted out of the
# render hot loop; plain JAX — the O(NPTS*Ppix) rasterization stays in Pallas).
# ----------------------------------------------------------------------------
def project_points_to_camera(R, T, focal, principal, pts, valid):
    """pts (3,NP), valid (1,NP) -> pattr (NP,4): [-2*x_ndc, -2*y_ndc, |p|^2, z_view|BIG]."""
    R = R.astype(F32)
    T = T.astype(F32)
    xw, yw, zw = pts[0], pts[1], pts[2]
    # world -> view :  X_view = X_world @ R + T
    xv = xw * R[0, 0] + yw * R[1, 0] + zw * R[2, 0] + T[0]
    yv = xw * R[0, 1] + yw * R[1, 1] + zw * R[2, 1] + T[1]
    zv = xw * R[0, 2] + yw * R[1, 2] + zw * R[2, 2] + T[2]
    zsafe = jnp.where(zv > Z_EPS, zv, 1.0)
    xn = focal[0].astype(F32) * xv / zsafe + principal[0].astype(F32)
    yn = focal[1].astype(F32) * yv / zsafe + principal[1].astype(F32)
    ok = (valid[0] > 0.5) & (zv > Z_EPS)
    # invalid / padded points get z = BIG -> never win the z-buffer
    return jnp.stack([-2.0 * xn, -2.0 * yn, xn * xn + yn * yn,
                      jnp.where(ok, zv, BIG)], axis=-1)         # (NP, 4)


# ----------------------------------------------------------------------------
# Kernel 2: render the point cloud into a target camera (hard z-buffer splat)
#           points on sublanes, pixels on lanes; z-buffer resident in out refs.
# ----------------------------------------------------------------------------
def render_kernel(pix_ref, pattr_ref, feats_ref, img_ref, depth_ref, mask_ref,
                  *, r2, inv_r2, bg):
    k = pl.program_id(1)

    @pl.when(k == 0)
    def _():
        img_ref[...] = jnp.zeros_like(img_ref)
        depth_ref[...] = jnp.full_like(depth_ref, BIG)
        mask_ref[...] = jnp.zeros_like(mask_ref)

    pix = pix_ref[...]                       # (5, TPIX): [x, y, 1, 0, |q|^2]
    attr = pattr_ref[...]                    # (TPTS, 4): [-2x, -2y, |p|^2, z|BIG]
    zv = attr[:, 3:4]                        # (TPTS, 1)

    # MXU: |p|^2 - 2*(x_p*x_q + y_p*y_q).  f32 / HIGHEST: bf16 cross-term error
    # (~1e-3) would swamp the r^2 = 1e-4 radius test.
    m = jnp.dot(attr, pix[0:4, :],
                precision=jax.lax.Precision.HIGHEST,
                preferred_element_type=jnp.float32)             # (TPTS, TPIX)
    d2 = m + pix[4:5, :]                                        # + |q|^2

    # radius test; out-of-radius, invalid and padded points all map to BIG
    zmat = jnp.where(d2 <= r2, zv, BIG)
    chunk_min = jnp.min(zmat, axis=0, keepdims=True)            # (1, TPIX)
    # argmin one-hot; if the chunk has no hit (chunk_min == BIG) the garbage
    # selection is discarded below by `better`.
    selmask = zmat == chunk_min
    sel = jnp.where(selmask, jnp.bfloat16(1.0), jnp.bfloat16(0.0))

    # weight of the winning splat(s): 1 - d2/r2 (averaged over exact-z ties)
    w_num = jnp.sum(jnp.where(selmask, r2 - d2, 0.0), axis=0, keepdims=True)

    # MXU one-hot gather: [r; g; b; 1] @ sel -> RGB sums + tie count
    acc4 = jnp.dot(feats_ref[...].astype(jnp.bfloat16), sel,
                   preferred_element_type=jnp.float32)          # (4, TPIX)
    inv_cnt = pl.reciprocal(jnp.maximum(acc4[3:4, :], 1.0), approx=True)
    rgb_chunk = acc4[0:3, :] * inv_cnt
    w_chunk = w_num * inv_r2 * inv_cnt

    better = chunk_min < depth_ref[...]                         # (1, TPIX)
    img_ref[...] = jnp.where(better, rgb_chunk, img_ref[...])
    mask_ref[...] = jnp.where(better, w_chunk, mask_ref[...])
    depth_ref[...] = jnp.where(better, chunk_min, depth_ref[...])

    @pl.when(k == pl.num_programs(1) - 1)
    def _():
        hit = depth_ref[...] < (0.5 * BIG)
        img_ref[...] = jnp.where(hit, jnp.clip(img_ref[...], 0.0, 1.0),
                                 jnp.float32(bg))               # .clamp(0,1) / bg
        depth_ref[...] = jnp.where(hit, depth_ref[...], 0.0)
        mask_ref[...] = jnp.where(hit & (mask_ref[...] > 1e-4), 1.0, 0.0)


def render_pointcloud(pattr, feats4, pix5, bg_color, radius, tpts, tpix):
    npts = pattr.shape[0]                    # already a multiple of tpts
    ppix = pix5.shape[1]
    pad_q = (-ppix) % tpix
    pix = jnp.pad(pix5, ((0, 0), (0, pad_q))) if pad_q else pix5
    n_pix = ppix + pad_q
    grid = (n_pix // tpix, npts // tpts)

    kernel = functools.partial(render_kernel,
                               r2=float(radius) ** 2,
                               inv_r2=1.0 / float(radius) ** 2,
                               bg=float(bg_color))
    img, dep, msk = pl.pallas_call(
        kernel,
        out_shape=(jax.ShapeDtypeStruct((3, n_pix), F32),
                   jax.ShapeDtypeStruct((1, n_pix), F32),
                   jax.ShapeDtypeStruct((1, n_pix), F32)),
        grid_spec=pltpu.PrefetchScalarGridSpec(
            num_scalar_prefetch=0,
            grid=grid,
            in_specs=[pl.BlockSpec((5, tpix), lambda i, k: (0, i)),
                      pl.BlockSpec((tpts, 4), lambda i, k: (k, 0)),
                      pl.BlockSpec((4, tpts), lambda i, k: (0, k))],
            out_specs=(pl.BlockSpec((3, tpix), lambda i, k: (0, i)),
                       pl.BlockSpec((1, tpix), lambda i, k: (0, i)),
                       pl.BlockSpec((1, tpix), lambda i, k: (0, i)))),
        compiler_params=pltpu.CompilerParams(
            dimension_semantics=("parallel", "arbitrary")),
    )(pix, pattr, feats4)
    return img[:, :ppix], dep[:, :ppix], msk[:, :ppix]


# ----------------------------------------------------------------------------
# Glue: ModelDBIR.forward
# ----------------------------------------------------------------------------
def ndc_grid(h, w):
    ys = 1.0 - (2.0 * jnp.arange(h, dtype=F32) + 1.0) / h   # +Y up
    xs = 1.0 - (2.0 * jnp.arange(w, dtype=F32) + 1.0) / w   # +X left
    yy, xx = jnp.meshgrid(ys, xs, indexing="ij")
    return jnp.stack([xx.reshape(-1), yy.reshape(-1)], axis=0)  # (2, H*W)


def pack_cam(R, T, focal, principal):
    return jnp.concatenate([focal, principal, T, R.reshape(-1)]).astype(F32)


def model_dbir_forward(cameras, image_rgb, depth_map, fg_probability, frame_type,
                       image_size=16, bg_color=0.0, max_points=-1):
    is_known = [ft.endswith("known") for ft in frame_type]
    known_idx = [i for i, k in enumerate(is_known) if k]
    target_idx = [i for i, k in enumerate(is_known) if not k]

    N, _, H, W = image_rgb.shape
    P = H * W
    tp = min(UNPROJ_TILE, _round_up(P, 128))     # large streaming lane tile
    PP = _round_up(P, tp)
    pad = PP - P

    xy_src = ndc_grid(H, W)                                   # (2, P) lane-dense
    if pad:
        xy_src = jnp.pad(xy_src, ((0, 0), (0, pad)))

    ki = jnp.array(known_idx)
    nk = len(known_idx)
    depth_k = depth_map[ki].reshape(nk, 1, P).astype(F32)
    fg_k = fg_probability[ki].reshape(nk, 1, P).astype(F32)
    rgb_k = image_rgb[ki].reshape(nk, 3, P).astype(F32)
    if pad:
        depth_k = jnp.pad(depth_k, ((0, 0), (0, 0), (0, pad)))   # depth 0 -> invalid
        fg_k = jnp.pad(fg_k, ((0, 0), (0, 0), (0, pad)))
        rgb_k = jnp.pad(rgb_k, ((0, 0), (0, 0), (0, pad)))

    # flattened 1-D SMEM camera table (avoids 2-D SMEM (8,128) padding)
    cams_flat = jnp.concatenate(
        [pack_cam(cameras["R"][i], cameras["T"][i],
                  cameras["focal_length"][i], cameras["principal_point"][i])
         for i in known_idx], axis=0)                          # (nk*16,)

    # one batched, tiled kernel over all known views -> pre-concatenated cloud
    pts_all, valid_all = unproject_points(cams_flat, xy_src, depth_k, fg_k, tp)
    feats_all = jnp.transpose(rgb_k, (1, 0, 2)).reshape(3, nk * PP)   # (3, NPTS)

    if max_points > 0 and pts_all.shape[1] > max_points:
        # TODO(synk): torch filters invalid points before randperm subsampling;
        # here we permute all (padded) slots with a fixed key.
        prm = jax.random.permutation(jax.random.PRNGKey(0),
                                     pts_all.shape[1])[:max_points]
        pts_all = pts_all[:, prm]
        valid_all = valid_all[:, prm]
        feats_all = feats_all[:, prm]

    # pad the point axis once to a multiple of the render point tile
    npts = pts_all.shape[1]
    tpts = min(RENDER_TPTS, _round_up(npts, 128))
    pad_p = (-npts) % tpts
    if pad_p:
        pts_all = jnp.pad(pts_all, ((0, 0), (0, pad_p)))
        valid_all = jnp.pad(valid_all, ((0, 0), (0, pad_p)))   # padded -> invalid
        feats_all = jnp.pad(feats_all, ((0, 0), (0, pad_p)))

    # lane-dense features + ones row (target-independent, built once)
    feats4 = jnp.concatenate(
        [feats_all, jnp.ones((1, feats_all.shape[1]), F32)], axis=0)  # (4, NPTS)

    # target-view pixel table: [x, y, 1, 0, |q|^2], lane-dense
    ppix = image_size * image_size
    pix_xy = ndc_grid(image_size, image_size)                 # (2, Ppix)
    qn = jnp.sum(pix_xy * pix_xy, axis=0, keepdims=True)
    pix5 = jnp.concatenate([pix_xy, jnp.ones((1, ppix), F32),
                            jnp.zeros((1, ppix), F32), qn], axis=0)   # (5, Ppix)
    tpix = _pick_pixel_tile(ppix)

    imgs, depths, masks = [], [], []
    for t in target_idx:
        pattr = project_points_to_camera(cameras["R"][t], cameras["T"][t],
                                         cameras["focal_length"][t],
                                         cameras["principal_point"][t],
                                         pts_all, valid_all)   # (NPTS, 4)
        img, dep, msk = render_pointcloud(pattr, feats4, pix5,
                                          bg_color, POINT_RADIUS, tpts, tpix)
        imgs.append(img.reshape(1, 3, image_size, image_size))
        depths.append(dep.reshape(1, 1, image_size, image_size))
        masks.append(msk.reshape(1, 1, image_size, image_size))

    nvs_prediction = {
        "depth_render": jnp.concatenate(depths, axis=0),
        "image_render": jnp.concatenate(imgs, axis=0),
        "mask_render": jnp.concatenate(masks, axis=0),
    }
    return {"nvs_prediction": nvs_prediction}


# ----------------------------------------------------------------------------
# Demo
# ----------------------------------------------------------------------------
def make_cameras(n):
    thetas = jnp.linspace(-0.2, 0.2, n)
    Rs, Ts = [], []
    for i in range(n):
        c = jnp.cos(thetas[i])
        s = jnp.sin(thetas[i])
        Rs.append(jnp.array([[c, 0.0, s],
                             [0.0, 1.0, 0.0],
                             [-s, 0.0, c]], dtype=F32))
        Ts.append(jnp.array([0.0, 0.0, 2.0 + 0.1 * i], dtype=F32))
    return {
        "R": jnp.stack(Rs),
        "T": jnp.stack(Ts),
        "focal_length": jnp.full((n, 2), 1.2, dtype=F32),
        "principal_point": jnp.zeros((n, 2), dtype=F32),
    }


if __name__ == "__main__":
    key = jax.random.PRNGKey(0)
    k1, k2, k3 = jax.random.split(key, 3)

    N, H, W = 3, 16, 16
    image_size = 16

    image_rgb = jax.random.uniform(k1, (N, 3, H, W), dtype=F32)
    depth_map = jax.random.uniform(k2, (N, 1, H, W), dtype=F32,
                                   minval=1.0, maxval=3.0)
    fg_probability = jax.random.uniform(k3, (N, 1, H, W), dtype=F32)
    frame_type = ["train_known", "train_known", "train_unseen"]
    cameras = make_cameras(N)

    preds = model_dbir_forward(cameras, image_rgb, depth_map, fg_probability,
                               frame_type, image_size=image_size,
                               bg_color=0.0, max_points=-1)
    preds = jax.block_until_ready(preds)

    nvs = preds["nvs_prediction"]
    assert nvs["image_render"].shape == (1, 3, image_size, image_size)
    assert nvs["depth_render"].shape == (1, 1, image_size, image_size)
    assert nvs["mask_render"].shape == (1, 1, image_size, image_size)
    assert bool(jnp.all(jnp.isfinite(nvs["image_render"])))
    print("KERNEL_OK")
</pallas_src>

<mosaic_0001>
module attributes {stable_mosaic.version = 11 : i64} {
  func.func @unproject_kernel(%arg0: i32, %arg1: i32, %arg2: memref<32xf32, #tpu.memory_space<smem>>, %arg3: memref<2x256xf32, #tpu.memory_space<vmem>>, %arg4: memref<1x1x256xf32, #tpu.memory_space<vmem>>, %arg5: memref<1x1x256xf32, #tpu.memory_space<vmem>>, %arg6: memref<3x256xf32, #tpu.memory_space<vmem>>, %arg7: memref<1x256xf32, #tpu.memory_space<vmem>>) attributes {dimension_semantics = [#tpu.dimension_semantics<parallel>, #tpu.dimension_semantics<parallel>], iteration_bounds = array<i64: 2, 1>, scalar_prefetch = 0 : i64, scratch_operands = 0 : i64, tpu.core_type = #tpu.core_type<tc>, window_params = [{transform_indices = @transform_0, window_bounds = array<i64: 32>}, {transform_indices = @transform_1, window_bounds = array<i64: 2, 256>}, {transform_indices = @transform_2, window_bounds = array<i64: 1, 1, 256>}, {transform_indices = @transform_3, window_bounds = array<i64: 1, 1, 256>}, {transform_indices = @transform_4, window_bounds = array<i64: 3, 256>}, {transform_indices = @transform_5, window_bounds = array<i64: 1, 256>}]} {
    %c16_i32 = arith.constant 16 : i32
    %0 = arith.muli %arg0, %c16_i32 : i32
    %c0_i32 = arith.constant 0 : i32
    %1 = arith.addi %0, %c0_i32 : i32
    %2 = arith.index_cast %1 : i32 to index
    %3 = memref.load %arg2[%2] : memref<32xf32, #tpu.memory_space<smem>>
    %c1_i32 = arith.constant 1 : i32
    %4 = arith.addi %0, %c1_i32 : i32
    %5 = arith.index_cast %4 : i32 to index
    %6 = memref.load %arg2[%5] : memref<32xf32, #tpu.memory_space<smem>>
    %c2_i32 = arith.constant 2 : i32
    %7 = arith.addi %0, %c2_i32 : i32
    %8 = arith.index_cast %7 : i32 to index
    %9 = memref.load %arg2[%8] : memref<32xf32, #tpu.memory_space<smem>>
    %c3_i32 = arith.constant 3 : i32
    %10 = arith.addi %0, %c3_i32 : i32
    %11 = arith.index_cast %10 : i32 to index
    %12 = memref.load %arg2[%11] : memref<32xf32, #tpu.memory_space<smem>>
    %c4_i32 = arith.constant 4 : i32
    %13 = arith.addi %0, %c4_i32 : i32
    %14 = arith.index_cast %13 : i32 to index
    %15 = memref.load %arg2[%14] : memref<32xf32, #tpu.memory_space<smem>>
    %c5_i32 = arith.constant 5 : i32
    %16 = arith.addi %0, %c5_i32 : i32
    %17 = arith.index_cast %16 : i32 to index
    %18 = memref.load %arg2[%17] : memref<32xf32, #tpu.memory_space<smem>>
    %c6_i32 = arith.constant 6 : i32
    %19 = arith.addi %0, %c6_i32 : i32
    %20 = arith.index_cast %19 : i32 to index
    %21 = memref.load %arg2[%20] : memref<32xf32, #tpu.memory_space<smem>>
    %c7_i32 = arith.constant 7 : i32
    %22 = arith.addi %0, %c7_i32 : i32
    %23 = arith.index_cast %22 : i32 to index
    %24 = memref.load %arg2[%23] : memref<32xf32, #tpu.memory_space<smem>>
    %c8_i32 = arith.constant 8 : i32
    %25 = arith.addi %0, %c8_i32 : i32
    %26 = arith.index_cast %25 : i32 to index
    %27 = memref.load %arg2[%26] : memref<32xf32, #tpu.memory_space<smem>>
    %c9_i32 = arith.constant 9 : i32
    %28 = arith.addi %0, %c9_i32 : i32
    %29 = arith.index_cast %28 : i32 to index
    %30 = memref.load %arg2[%29] : memref<32xf32, #tpu.memory_space<smem>>
    %c10_i32 = arith.constant 10 : i32
    %31 = arith.addi %0, %c10_i32 : i32
    %32 = arith.index_cast %31 : i32 to index
    %33 = memref.load %arg2[%32] : memref<32xf32, #tpu.memory_space<smem>>
    %c11_i32 = arith.constant 11 : i32
    %34 = arith.addi %0, %c11_i32 : i32
    %35 = arith.index_cast %34 : i32 to index
    %36 = memref.load %arg2[%35] : memref<32xf32, #tpu.memory_space<smem>>
    %c12_i32 = arith.constant 12 : i32
    %37 = arith.addi %0, %c12_i32 : i32
    %38 = arith.index_cast %37 : i32 to index
    %39 = memref.load %arg2[%38] : memref<32xf32, #tpu.memory_space<smem>>
    %c13_i32 = arith.constant 13 : i32
    %40 = arith.addi %0, %c13_i32 : i32
    %41 = arith.index_cast %40 : i32 to index
    %42 = memref.load %arg2[%41] : memref<32xf32, #tpu.memory_space<smem>>
    %c14_i32 = arith.constant 14 : i32
    %43 = arith.addi %0, %c14_i32 : i32
    %44 = arith.index_cast %43 : i32 to index
    %45 = memref.load %arg2[%44] : memref<32xf32, #tpu.memory_space<smem>>
    %c15_i32 = arith.constant 15 : i32
    %46 = arith.addi %0, %c15_i32 : i32
    %47 = arith.index_cast %46 : i32 to index
    %48 = memref.load %arg2[%47] : memref<32xf32, #tpu.memory_space<smem>>
    %cst = arith.constant 1.000000e+00 : f32
    %49 = arith.divf %cst, %3 : f32
    %cst_0 = arith.constant 1.000000e+00 : f32
    %50 = arith.divf %cst_0, %6 : f32
    %c0 = arith.constant 0 : index
    %c0_1 = arith.constant 0 : index
    %51 = vector.load %arg3[%c0, %c0_1] : memref<2x256xf32, #tpu.memory_space<vmem>>, vector<2x256xf32>
    %c0_2 = arith.constant 0 : index
    %c0_3 = arith.constant 0 : index
    %c0_4 = arith.constant 0 : index
    %52 = vector.load %arg4[%c0_2, %c0_3, %c0_4] : memref<1x1x256xf32, #tpu.memory_space<vmem>>, vector<1x1x256xf32>
    %53 = vector.shape_cast %52 : vector<1x1x256xf32> to vector<1x256xf32>
    %c0_5 = arith.constant 0 : index
    %c0_6 = arith.constant 0 : index
    %c0_7 = arith.constant 0 : index
    %54 = vector.load %arg5[%c0_5, %c0_6, %c0_7] : memref<1x1x256xf32, #tpu.memory_space<vmem>>, vector<1x1x256xf32>
    %55 = vector.shape_cast %54 : vector<1x1x256xf32> to vector<1x256xf32>
    %56 = vector.extract_strided_slice %51 {offsets = [0, 0], sizes = [1, 256], strides = [1, 1]} : vector<2x256xf32> to vector<1x256xf32>
    %57 = vector.broadcast %9 : f32 to vector<1x256xf32>
    %58 = arith.subf %56, %57 : vector<1x256xf32>
    %59 = arith.mulf %58, %53 : vector<1x256xf32>
    %60 = vector.broadcast %49 : f32 to vector<1x256xf32>
    %61 = arith.mulf %59, %60 : vector<1x256xf32>
    %62 = vector.extract_strided_slice %51 {offsets = [1, 0], sizes = [1, 256], strides = [1, 1]} : vector<2x256xf32> to vector<1x256xf32>
    %63 = vector.broadcast %12 : f32 to vector<1x256xf32>
    %64 = arith.subf %62, %63 : vector<1x256xf32>
    %65 = arith.mulf %64, %53 : vector<1x256xf32>
    %66 = vector.broadcast %50 : f32 to vector<1x256xf32>
    %67 = arith.mulf %65, %66 : vector<1x256xf32>
    %68 = vector.broadcast %15 : f32 to vector<1x256xf32>
    %69 = arith.subf %61, %68 : vector<1x256xf32>
    %70 = vector.broadcast %18 : f32 to vector<1x256xf32>
    %71 = arith.subf %67, %70 : vector<1x256xf32>
    %72 = vector.broadcast %21 : f32 to vector<1x256xf32>
    %73 = arith.subf %53, %72 : vector<1x256xf32>
    %74 = vector.broadcast %24 : f32 to vector<1x256xf32>
    %75 = arith.mulf %69, %74 : vector<1x256xf32>
    %76 = vector.broadcast %27 : f32 to vector<1x256xf32>
    %77 = arith.mulf %71, %76 : vector<1x256xf32>
    %78 = arith.addf %75, %77 : vector<1x256xf32>
    %79 = vector.broadcast %30 : f32 to vector<1x256xf32>
    %80 = arith.mulf %73, %79 : vector<1x256xf32>
    %81 = arith.addf %78, %80 : vector<1x256xf32>
    %82 = vector.broadcast %33 : f32 to vector<1x256xf32>
    %83 = arith.mulf %69, %82 : vector<1x256xf32>
    %84 = vector.broadcast %36 : f32 to vector<1x256xf32>
    %85 = arith.mulf %71, %84 : vector<1x256xf32>
    %86 = arith.addf %83, %85 : vector<1x256xf32>
    %87 = vector.broadcast %39 : f32 to vector<1x256xf32>
    %88 = arith.mulf %73, %87 : vector<1x256xf32>
    %89 = arith.addf %86, %88 : vector<1x256xf32>
    %90 = vector.broadcast %42 : f32 to vector<1x256xf32>
    %91 = arith.mulf %69, %90 : vector<1x256xf32>
    %92 = vector.broadcast %45 : f32 to vector<1x256xf32>
    %93 = arith.mulf %71, %92 : vector<1x256xf32>
    %94 = arith.addf %91, %93 : vector<1x256xf32>
    %95 = vector.broadcast %48 : f32 to vector<1x256xf32>
    %96 = arith.mulf %73, %95 : vector<1x256xf32>
    %97 = arith.addf %94, %96 : vector<1x256xf32>
    %98 = tpu.concatenate %81, %89, %97 in 0 : vector<1x256xf32>, vector<1x256xf32>, vector<1x256xf32> -> vector<3x256xf32>
    %c0_8 = arith.constant 0 : index
    %c0_9 = arith.constant 0 : index
    %99 = vector.load %arg6[%c0_8, %c0_9] : memref<3x256xf32, #tpu.memory_space<vmem>>, vector<3x256xf32>
    tpu.vector_store %arg6[%c0_8, %c0_9], %98 {strides = array<i32>} : memref<3x256xf32, #tpu.memory_space<vmem>>, vector<3x256xf32>,
    %cst_10 = arith.constant 0.000000e+00 : f32
    %100 = vector.broadcast %cst_10 : f32 to vector<1x256xf32>
    %101 = arith.cmpf ogt, %53, %100 : vector<1x256xf32>
    %cst_11 = arith.constant 5.000000e-01 : f32
    %102 = vector.broadcast %cst_11 : f32 to vector<1x256xf32>
    %103 = arith.cmpf ogt, %55, %102 : vector<1x256xf32>
    %104 = arith.andi %101, %103 : vector<1x256xi1>
    %105 = arith.extui %104 : vector<1x256xi1> to vector<1x256xi32>
    %106 = arith.sitofp %105 : vector<1x256xi32> to vector<1x256xf32>
    %c0_12 = arith.constant 0 : index
    %c0_13 = arith.constant 0 : index
    %107 = vector.load %arg7[%c0_12, %c0_13] : memref<1x256xf32, #tpu.memory_space<vmem>>, vector<1x256xf32>
    tpu.vector_store %arg7[%c0_12, %c0_13], %106 {strides = array<i32>} : memref<1x256xf32, #tpu.memory_space<vmem>>, vector<1x256xf32>,
    return
  }
  func.func @transform_0(%arg0: i32, %arg1: i32) -> i32 {
    %c0_i32 = arith.constant 0 : i32
    %c0_i32_0 = arith.constant 0 : i32
    return %c0_i32 : i32
  }
  func.func @transform_1(%arg0: i32, %arg1: i32) -> (i32, i32) {
    %c0_i32 = arith.constant 0 : i32
    %c0_i32_0 = arith.constant 0 : i32
    return %c0_i32, %arg1 : i32, i32
  }
  func.func @transform_2(%arg0: i32, %arg1: i32) -> (i32, i32, i32) {
    %c0_i32 = arith.constant 0 : i32
    %c0_i32_0 = arith.constant 0 : i32
    return %arg0, %c0_i32, %arg1 : i32, i32, i32
  }
  func.func @transform_3(%arg0: i32, %arg1: i32) -> (i32, i32, i32) {
    %c0_i32 = arith.constant 0 : i32
    %c0_i32_0 = arith.constant 0 : i32
    return %arg0, %c0_i32, %arg1 : i32, i32, i32
  }
  func.func @transform_4(%arg0: i32, %arg1: i32) -> (i32, i32) {
    %c1_i32 = arith.constant 1 : i32
    %0 = arith.muli %arg0, %c1_i32 : i32
    %1 = arith.addi %0, %arg1 : i32
    %c0_i32 = arith.constant 0 : i32
    %c0_i32_0 = arith.constant 0 : i32
    return %c0_i32, %1 : i32, i32
  }
  func.func @transform_5(%arg0: i32, %arg1: i32) -> (i32, i32) {
    %c1_i32 = arith.constant 1 : i32
    %0 = arith.muli %arg0, %c1_i32 : i32
    %1 = arith.addi %0, %arg1 : i32
    %c0_i32 = arith.constant 0 : i32
    %c0_i32_0 = arith.constant 0 : i32
    return %c0_i32, %1 : i32, i32
  }
}

</mosaic_0001>

<llo_original>
// kernel: tpu_custom_call.1
$region0: #{tpu_custom_call.1}
  #allocation0 [shape = 'u32[]', space=smem, size = 0x4, offset = 0x4, fixed_abs, tag = 'smem constant byte address 0x4 - core index']
  #allocation1 [shape = 'u32[144,128]{1,0:T(1,128)}', space=vmem, size = 0x12000, scoped, tag = 'internal scratch']
  %s0 = inlined_call_operand.hbm [shape: f32[32], index: 0, kind: input, shape index: {}]
  %s1 = inlined_call_operand.hbm [shape: f32[2,256], index: 1, kind: input, shape index: {}]
  %s2 = inlined_call_operand.vmem [shape: f32[2,1,256], index: 2, kind: input, shape index: {}]
  %s3 = inlined_call_operand.vmem [shape: f32[2,1,256], index: 3, kind: input, shape index: {}]
  %s4 = inlined_call_operand.hbm [shape: f32[3,512], index: 4, kind: output, shape index: {0}]
  %s5 = inlined_call_operand.hbm [shape: f32[1,512], index: 5, kind: output, shape index: {1}]
  %6 = xla_tuple %s4, %s5
  %s7 = sld [smem:[#allocation0]]
  $region65: #{tpu_custom_call.1} parent=0
    _
  %s9 = ssub.s32 1, %s7
  %s10 = scalar_select 0, %s9, %s7
  $region1: #{tpu_custom_call.1} parent=0
    #allocation2 [shape = 'u8[512]{0}', space=smem, size = 0x200, scoped, tag = 'input window, operand 0, single buffered']
    #allocation3 [shape = 's32[2]{0}', space=sflag, size = 0x8, scoped, tag = 'scoped memory for tpu_custom_call.1']
    #allocation4 [shape = 's32[2]{0}', space=sflag, size = 0x8, scoped, tag = 'scoped memory for tpu_custom_call.1']
    #allocation5 [shape = 's32[2]{0}', space=sflag, size = 0x8, scoped, tag = 'scoped memory for tpu_custom_call.1']
    #allocation6 [shape = 'u8[2048]{0}', space=vmem, size = 0x800, scoped, tag = 'input window, operand 1, single buffered']
    #allocation7 [shape = 'u8[8192]{0}', space=vmem, size = 0x2000, scoped, tag = 'output window, operand 0']
    #allocation8 [shape = 'u8[2048]{0}', space=vmem, size = 0x800, scoped, tag = 'output window, operand 1']
    #allocation9 [shape = 's32[2]{0}', space=sflag, size = 0x8, scoped, tag = 'scoped memory for tpu_custom_call.1']
    %11 = vsyncpa [#allocation5], 0
    %12 = vsyncpa [#allocation3], 0
    %13 = vsyncpa [#allocation4], 0
    %s14 = scalar_lea.sflag [#allocation4], 1
    %15 = vsyncpa %s14, 0
    %16 = vsyncpa [#allocation9], 0
    %s17 = scalar_lea.sflag [#allocation9], 1
    %18 = vsyncpa %s17, 0
    loop: start=0, step=1, limit=4
    $region2: #{tpu_custom_call.1} parent=1 // loop_pre_header
      _
    $region3: #{tpu_custom_call.1} parent=1 // loop_header
      %s20 = sphi 0, %s24
      %p21 = scmp.ge.s32.totalorder %s20, 4
      %s27 = sphi 0, %s39
      %s28 = sphi 0, %s35
      %s29 = sphi 0, %s27
      %s30 = sphi 0, %s28
      %s31 = sphi 0, %s29
      %s32 = sphi 0, %s30
      %s40 = sphi 0, %s40
      %s42 = sphi 0, %s40
      %s43 = sphi 0, %s42
      %s57 = sphi 0, %s43
      %s63 = sphi 0, %s65
      %s66 = sphi 0, %s63
      %s67 = sphi 0, %s66
      %s83 = sphi 0, %s67
      %s91 = sphi 0, %s93
      %s94 = sphi 0, %s91
      %s95 = sphi 0, %s94
      %s111 = sphi 0, %s95
      %s119 = sphi 0, %s121
      %s122 = sphi 0, %s119
      %s123 = sphi 0, %s122
      %s139 = sphi 0, %s123
      %s147 = sphi 0, %s149
      %s150 = sphi 0, %s147
      %s151 = sphi 0, %s150
      %s167 = sphi 0, %s151
      %s175 = sphi 0, %s177
      %s178 = sphi 0, %s175
      %s179 = sphi 0, %s178
      %s195 = sphi 0, %s179
    $region4: #{tpu_custom_call.1} parent=1 // loop_header_branch
      %23 = sbr.rel (%p21) target = $region8
    $region5: #{tpu_custom_call.1} parent=1 // loop_body
      %s25 = ssub.s32 %s20, 1
      %s26 = ssub.s32 %s20, 2
      %s33 = sadd.s32 1, %s28
      %p34 = scmp.ge.s32.totalorder %s33, 1
      %s35 = scalar_select %p34, 0, %s33
      %s36 = sadd.s32 1, %s27
      %s37 = scalar_select %p34, %s36, %s27
      %p38 = scmp.ge.s32.totalorder %s37, 2
      %s39 = scalar_select %p38, 0, %s37
      %s41 = sadd.s32 %s40, 1
      %p44 = scmp.eq.s32.totalorder %s20, 1
      %p45 = scmp.ne.s32.totalorder %s40, %s42
      %p46 = scmp.eq.s32.totalorder %s20, 0
      %p47 = por %p45, %p46
      %p48 = scmp.ne.s32.totalorder %s40, %s42
      %p49 = scmp.eq.s32.totalorder %s25, 1
      %p50 = por %p48, %p49
      %p51 = scmp.ne.s32.totalorder %s42, %s43
      %p52 = scmp.eq.s32.totalorder %s25, 0
      %p53 = por %p51, %p52
      %p54 = scmp.ne.s32.totalorder %s42, %s43
      %p55 = scmp.eq.s32.totalorder %s26, 1
      %p56 = por %p54, %p55
      %p58 = scmp.ne.s32.totalorder %s43, %s57
      %p59 = scmp.eq.s32.totalorder %s26, 0
      %p60 = por %p58, %p59
      %s61 = ssub.s32 %s28, %s35
      %p62 = scmp.eq.s32.totalorder %s61, 0
      %s64 = sadd.s32 %s63, 1
      %s65 = scalar_select %p62, %s63, %s64
      %p68 = pneg %p62
      %p69 = scmp.eq.s32.totalorder %s20, 1
      %p70 = por %p68, %p69
      %p71 = scmp.ne.s32.totalorder %s63, %s66
      %p72 = scmp.eq.s32.totalorder %s20, 0
      %p73 = por %p71, %p72
      %p74 = scmp.ne.s32.totalorder %s63, %s66
      %p75 = scmp.eq.s32.totalorder %s25, 1
      %p76 = por %p74, %p75
      %p77 = scmp.ne.s32.totalorder %s66, %s67
      %p78 = scmp.eq.s32.totalorder %s25, 0
      %p79 = por %p77, %p78
      %p80 = scmp.ne.s32.totalorder %s66, %s67
      %p81 = scmp.eq.s32.totalorder %s26, 1
      %p82 = por %p80, %p81
      %p84 = scmp.ne.s32.totalorder %s67, %s83
      %p85 = scmp.eq.s32.totalorder %s26, 0
      %p86 = por %p84, %p85
      %s87 = ssub.s32 %s27, %s39
      %s88 = ssub.s32 %s28, %s35
      %s89 = sor.u32 %s87, %s88
      %p90 = scmp.eq.s32.totalorder %s89, 0
      %s92 = sadd.s32 %s91, 1
      %s93 = scalar_select %p90, %s91, %s92
      %p96 = pneg %p90
      %p97 = scmp.eq.s32.totalorder %s20, 1
      %p98 = por %p96, %p97
      %p99 = scmp.ne.s32.totalorder %s91, %s94
      %p100 = scmp.eq.s32.totalorder %s20, 0
      %p101 = por %p99, %p100
      %p102 = scmp.ne.s32.totalorder %s91, %s94
      %p103 = scmp.eq.s32.totalorder %s25, 1
      %p104 = por %p102, %p103
      %p105 = scmp.ne.s32.totalorder %s94, %s95
      %p106 = scmp.eq.s32.totalorder %s25, 0
      %p107 = por %p105, %p106
      %p108 = scmp.ne.s32.totalorder %s94, %s95
      %p109 = scmp.eq.s32.totalorder %s26, 1
      %p110 = por %p108, %p109
      %p112 = scmp.ne.s32.totalorder %s95, %s111
      %p113 = scmp.eq.s32.totalorder %s26, 0
      %p114 = por %p112, %p113
      %s115 = ssub.s32 %s27, %s39
      %s116 = ssub.s32 %s28, %s35
      %s117 = sor.u32 %s115, %s116
      %p118 = scmp.eq.s32.totalorder %s117, 0
      %s120 = sadd.s32 %s119, 1
      %s121 = scalar_select %p118, %s119, %s120
      %p124 = pneg %p118
      %p125 = scmp.eq.s32.totalorder %s20, 1
      %p126 = por %p124, %p125
      %p127 = scmp.ne.s32.totalorder %s119, %s122
      %p128 = scmp.eq.s32.totalorder %s20, 0
      %p129 = por %p127, %p128
      %p130 = scmp.ne.s32.totalorder %s119, %s122
      %p131 = scmp.eq.s32.totalorder %s25, 1
      %p132 = por %p130, %p131
      %p133 = scmp.ne.s32.totalorder %s122, %s123
      %p134 = scmp.eq.s32.totalorder %s25, 0
      %p135 = por %p133, %p134
      %p136 = scmp.ne.s32.totalorder %s122, %s123
      %p137 = scmp.eq.s32.totalorder %s26, 1
      %p138 = por %p136, %p137
      %p140 = scmp.ne.s32.totalorder %s123, %s139
      %p141 = scmp.eq.s32.totalorder %s26, 0
      %p142 = por %p140, %p141
      %s143 = sadd.s32 %s27, %s28
      %s144 = sadd.s32 %s39, %s35
      %s145 = ssub.s32 %s143, %s144
      %p146 = scmp.eq.s32.totalorder %s145, 0
      %s148 = sadd.s32 %s147, 1
      %s149 = scalar_select %p146, %s147, %s148
      %p152 = pneg %p146
      %p153 = scmp.eq.s32.totalorder %s20, 1
      %p154 = por %p152, %p153
      %p155 = scmp.ne.s32.totalorder %s147, %s150
      %p156 = scmp.eq.s32.totalorder %s20, 0
      %p157 = por %p155, %p156
      %p158 = scmp.ne.s32.totalorder %s147, %s150
      %p159 = scmp.eq.s32.totalorder %s25, 1
      %p160 = por %p158, %p159
      %p161 = scmp.ne.s32.totalorder %s150, %s151
      %p162 = scmp.eq.s32.totalorder %s25, 0
      %p163 = por %p161, %p162
      %p164 = scmp.ne.s32.totalorder %s150, %s151
      %p165 = scmp.eq.s32.totalorder %s26, 1
      %p166 = por %p164, %p165
      %p168 = scmp.ne.s32.totalorder %s151, %s167
      %p169 = scmp.eq.s32.totalorder %s26, 0
      %p170 = por %p168, %p169
      %s171 = sadd.s32 %s27, %s28
      %s172 = sadd.s32 %s39, %s35
      %s173 = ssub.s32 %s171, %s172
      %p174 = scmp.eq.s32.totalorder %s173, 0
      %s176 = sadd.s32 %s175, 1
      %s177 = scalar_select %p174, %s175, %s176
      %p180 = pneg %p174
      %p181 = scmp.eq.s32.totalorder %s20, 1
      %p182 = por %p180, %p181
      %p183 = scmp.ne.s32.totalorder %s175, %s178
      %p184 = scmp.eq.s32.totalorder %s20, 0
      %p185 = por %p183, %p184
      %p186 = scmp.ne.s32.totalorder %s175, %s178
      %p187 = scmp.eq.s32.totalorder %s25, 1
      %p188 = por %p186, %p187
      %p189 = scmp.ne.s32.totalorder %s178, %s179
      %p190 = scmp.eq.s32.totalorder %s25, 0
      %p191 = por %p189, %p190
      %p192 = scmp.ne.s32.totalorder %s178, %s179
      %p193 = scmp.eq.s32.totalorder %s26, 1
      %p194 = por %p192, %p193
      %p196 = scmp.ne.s32.totalorder %s179, %s195
      %p197 = scmp.eq.s32.totalorder %s26, 0
      %p198 = por %p196, %p197
      %p199 = scmp.le.s32.totalorder 1, %s20
      %p200 = scmp.lt.s32.totalorder %s20, 3
      %p201 = pnand %p199, %p200
      %p202 = pneg %p201
      // Predicated region
      $region9: #{tpu_custom_call.1} parent=5 // pred_check
        _
      $region10: #{tpu_custom_call.1} parent=5 // pred_check_branch
        %204 = sbr.rel (%p201) target = $region12
      $region11: #{tpu_custom_call.1} parent=5 // pred_region
        %s205 = ssub.s32 %s20, 1
        // Predicated region
        $region13: #{tpu_custom_call.1} parent=11 // pred_check
          %p206 = pneg %p53
        $region14: #{tpu_custom_call.1} parent=11 // pred_check_branch
          %208 = sbr.rel (%p206) target = $region16
        $region15: #{tpu_custom_call.1} parent=11 // pred_region
          %s210 = ssub.s32 16, 16
          %211 = vsyncadd [#allocation5], %s210
          %214 = dma.hbm_to_smem %s0, 16, [#allocation2], [#allocation5]
        $region16: #{tpu_custom_call.1} parent=11 // pred_fallthru
          _
        // Predicated region
        $region17: #{tpu_custom_call.1} parent=11 // pred_check
          %p215 = pneg %p79
        $region18: #{tpu_custom_call.1} parent=11 // pred_check_branch
          %217 = sbr.rel (%p215) target = $region20
        $region19: #{tpu_custom_call.1} parent=11 // pred_region
          %s218 = smul.u32 2, %s30
          %s220 = ssub.s32 64, 64
          %221 = vsyncadd [#allocation3], %s220
          %s222 = smul.addr %s218, 32
          %s223 = scalar_lea.hbm %s1, %s222
          %s225 = sshll.u32 [#allocation6], 4
          %s226 = int_to_ptr.vmem [resolvable:$true] %s225
          %228 = dma.hbm_to_vmem [thread:$0]  %s223, 64, %s226, [#allocation3]
        $region20: #{tpu_custom_call.1} parent=11 // pred_fallthru
          _
      $region12: #{tpu_custom_call.1} parent=5 // pred_fallthru
        _
      %p229 = scmp.lt.s32.totalorder %s20, 2
      // Predicated region
      $region21: #{tpu_custom_call.1} parent=5 // pred_check
        %p230 = pneg %p229
      $region22: #{tpu_custom_call.1} parent=5 // pred_check_branch
        %232 = sbr.rel (%p230) target = $region24
      $region23: #{tpu_custom_call.1} parent=5 // pred_region
        // Predicated region
        $region25: #{tpu_custom_call.1} parent=23 // pred_check
          %p233 = pneg %p101
        $region26: #{tpu_custom_call.1} parent=23 // pred_check_branch
          %235 = sbr.rel (%p233) target = $region28
        $region27: #{tpu_custom_call.1} parent=23 // pred_region
          %s236 = smul.u32 2, %s28
          %p237 = scmp.lt.s32.totalorder %s27, 1
          %s238 = scalar_select %p237, %s27, 1
          %p239 = scmp.lt.s32.totalorder %s236, 1
          %s240 = scalar_select %p239, %s236, 1
          %s241 = smul.addr %s238, 2
          %s242 = sadd.s32 %s240, %s241
          %s243 = scalar_lea.vmem %s2, %s242
          %s244 = smul.u32 2, %s28
        $region28: #{tpu_custom_call.1} parent=23 // pred_fallthru
          _
        // Predicated region
        $region29: #{tpu_custom_call.1} parent=23 // pred_check
          %p245 = pneg %p129
        $region30: #{tpu_custom_call.1} parent=23 // pred_check_branch
          %247 = sbr.rel (%p245) target = $region32
        $region31: #{tpu_custom_call.1} parent=23 // pred_region
          %s248 = smul.u32 2, %s28
          %p249 = scmp.lt.s32.totalorder %s27, 1
          %s250 = scalar_select %p249, %s27, 1
          %p251 = scmp.lt.s32.totalorder %s248, 1
          %s252 = scalar_select %p251, %s248, 1
          %s253 = smul.addr %s250, 2
          %s254 = sadd.s32 %s252, %s253
          %s255 = scalar_lea.vmem %s3, %s254
          %s256 = smul.u32 2, %s28
        $region32: #{tpu_custom_call.1} parent=23 // pred_fallthru
          _
      $region24: #{tpu_custom_call.1} parent=5 // pred_fallthru
        _
      %p257 = scmp.le.s32.totalorder 1, %s20
      %p258 = scmp.lt.s32.totalorder %s20, 3
      %p259 = pnand %p257, %p258
      %p260 = pneg %p259
      // Predicated region
      $region33: #{tpu_custom_call.1} parent=5 // pred_check
        _
      $region34: #{tpu_custom_call.1} parent=5 // pred_check_branch
        %262 = sbr.rel (%p259) target = $region36
      $region35: #{tpu_custom_call.1} parent=5 // pred_region
        %s263 = ssub.s32 %s20, 1
        // Predicated region
        $region37: #{tpu_custom_call.1} parent=35 // pred_check
          %p264 = pneg %p53
        $region38: #{tpu_custom_call.1} parent=35 // pred_check_branch
          %266 = sbr.rel (%p264) target = $region40
        $region39: #{tpu_custom_call.1} parent=35 // pred_region
          %267 = dma.done [#allocation5], 16
        $region40: #{tpu_custom_call.1} parent=35 // pred_fallthru
          _
        // Predicated region
        $region41: #{tpu_custom_call.1} parent=35 // pred_check
          %p268 = pneg %p79
        $region42: #{tpu_custom_call.1} parent=35 // pred_check_branch
          %270 = sbr.rel (%p268) target = $region44
        $region43: #{tpu_custom_call.1} parent=35 // pred_region
          %271 = dma.done [#allocation3], 64
        $region44: #{tpu_custom_call.1} parent=35 // pred_fallthru
          _
        %272 = sfence
        %p273 = pneg %p53
        %p274 = pneg %p50
        %p275 = pneg %p79
        %p276 = pneg %p76
        %s277 = smul.u32 2, %s30
        %p278 = scmp.lt.s32.totalorder %s29, 1
        %s279 = scalar_select %p278, %s29, 1
        %p280 = scmp.lt.s32.totalorder %s277, 1
        %s281 = scalar_select %p280, %s277, 1
        %s282 = smul.addr %s279, 2
        %s283 = sadd.s32 %s281, %s282
        %s284 = scalar_lea.vmem %s2, %s283
        %p285 = pneg %p107
        %p286 = pneg %p104
        %s287 = smul.u32 2, %s30
        %p288 = scmp.lt.s32.totalorder %s29, 1
        %s289 = scalar_select %p288, %s29, 1
        %p290 = scmp.lt.s32.totalorder %s287, 1
        %s291 = scalar_select %p290, %s287, 1
        %s292 = smul.addr %s289, 2
        %s293 = sadd.s32 %s291, %s292
        %s294 = scalar_lea.vmem %s3, %s293
        %p295 = pneg %p135
        %p296 = pneg %p132
        %p297 = pneg %p163
        %p298 = pneg %p160
        %s299 = sand.u32 %s150, 1
        %s300 = scalar_lea.sflag [#allocation4], %s299
        %s301 = sand.u32 %s150, 1
        %s302 = smul.addr %s301, 8
        %s303 = scalar_lea.vmem [#allocation7], %s302
        %p304 = pneg %p191
        %p305 = pneg %p188
        %s306 = sand.u32 %s178, 1
        %s307 = scalar_lea.sflag [#allocation9], %s306
        %s308 = sand.u32 %s178, 1
        %s309 = smul.addr %s308, 2
        %s310 = scalar_lea.vmem [#allocation8], %s309
        %s311 = smul.u32 2, %s30
        %s312 = smul.u32 2, %s30
        %p313 = scmp.lt.s32.totalorder %s29, 1
        %s314 = scalar_select %p313, %s29, 1
        %p315 = scmp.lt.s32.totalorder %s312, 1
        %s316 = scalar_select %p315, %s312, 1
        %s317 = smul.addr %s314, 2
        %s318 = sadd.s32 %s316, %s317
        %s319 = scalar_lea.vmem %s2, %s318
        %s320 = smul.u32 2, %s30
        %s321 = smul.u32 2, %s30
        %p322 = scmp.lt.s32.totalorder %s29, 1
        %s323 = scalar_select %p322, %s29, 1
        %p324 = scmp.lt.s32.totalorder %s321, 1
        %s325 = scalar_select %p324, %s321, 1
        %s326 = smul.addr %s323, 2
        %s327 = sadd.s32 %s325, %s326
        %s328 = scalar_lea.vmem %s3, %s327
        %s329 = smul.u32 2, %s30
        %s330 = sadd.s32 %s29, %s30
        %s331 = smul.u32 2, %s330
        %s332 = sadd.s32 %s29, %s30
        %s333 = smul.u32 2, %s332
        %s334 = smul.u32 %s29, 16
        %s335 = sld [smem:[#allocation2 + %s334]]
        %s336 = sadd.s32 %s334, 1
        %s337 = sld [smem:[#allocation2 + %s336]]
        %s338 = sadd.s32 %s334, 2
        %s339 = sld [smem:[#allocation2 + %s338]]
        %s340 = sadd.s32 %s334, 3
        %s341 = sld [smem:[#allocation2 + %s340]]
        %s342 = sadd.s32 %s334, 4
        %s343 = sld [smem:[#allocation2 + %s342]]
        %s344 = sadd.s32 %s334, 5
        %s345 = sld [smem:[#allocation2 + %s344]]
        %s346 = sadd.s32 %s334, 6
        %s347 = sld [smem:[#allocation2 + %s346]]
        %s348 = sadd.s32 %s334, 7
        %s349 = sld [smem:[#allocation2 + %s348]]
        %s350 = sadd.s32 %s334, 8
        %s351 = sld [smem:[#allocation2 + %s350]]
        %s352 = sadd.s32 %s334, 9
        %s353 = sld [smem:[#allocation2 + %s352]]
        %s354 = sadd.s32 %s334, 10
        %s355 = sld [smem:[#allocation2 + %s354]]
        %s356 = sadd.s32 %s334, 11
        %s357 = sld [smem:[#allocation2 + %s356]]
        %s358 = sadd.s32 %s334, 12
        %s359 = sld [smem:[#allocation2 + %s358]]
        %s360 = sadd.s32 %s334, 13
        %s361 = sld [smem:[#allocation2 + %s360]]
        %s362 = sadd.s32 %s334, 14
        %s363 = sld [smem:[#allocation2 + %s362]]
        %s364 = sadd.s32 %s334, 15
        %s365 = sld [smem:[#allocation2 + %s364]]
        %v366 = vstv %s335
        %v367 = vrcp.pop %v366
        %s368 = vtos %v367
        %v369 = vstv %s337
        %v370 = vrcp.pop %v369
        %s371 = vtos %v370
        %v372 = vld [vmem:[#allocation6] sm:$0xf]
        %v373 = vld [vmem:[%s319] sm:$0x3]
        %v374 = vld [vmem:[%s328] sm:$0x3]
        %v375 = vstv %s339
        %v376 = vsub.f32 %v372, %v375
        %v379 = vunpack.c.l.s4 857870592
        %v380 = vunpack.c.0.s8 %v379
        %v381 = vlaneseq
        %v382 = vshrl.u32 %v381, 7
        %v383 = vsub.s32 %v380, %v382
        %v384 = vrot.slane %v373, %v383
        %v386 = vmul.f32 %v376, %v384
        %v387 = vstv %s368
        %v388 = vmul.f32 %v386, %v387
        %v389 = vstv %s341
        %v390 = vsub.f32 %v372, %v389
        %v391 = vmul.f32 %v390, %v384
        %v392 = vstv %s371
        %v393 = vmul.f32 %v391, %v392
        %v394 = vstv %s343
        %v395 = vsub.f32 %v388, %v394
        %v396 = vstv %s345
        %v397 = vsub.f32 %v393, %v396
        %v398 = vstv %s347
        %v399 = vsub.f32 %v373, %v398
        %v400 = vstv %s349
        %v401 = vmul.f32 %v395, %v400
        %v402 = vstv %s351
        %v403 = vmul.f32 %v397, %v402
        %v405 = vrot.slane %v403, 7
        %v406 = vrot.slane %v405, 2
        %v408 = vadd.f32 %v401, %v406
        %v409 = vstv %s353
        %v410 = vmul.f32 %v399, %v409
        %v413 = vunpack.c.l.s4 857870592
        %v414 = vunpack.c.0.s8 %v413
        %v415 = vlaneseq
        %v416 = vshrl.u32 %v415, 7
        %v417 = vsub.s32 %v414, %v416
        %v418 = vrot.slane %v410, %v417
        %v420 = vadd.f32 %v408, %v418
        %v421 = vstv %s355
        %v422 = vmul.f32 %v395, %v421
        %v423 = vstv %s357
        %v424 = vmul.f32 %v397, %v423
        %v426 = vrot.slane %v424, 7
        %v427 = vrot.slane %v426, 2
        %v429 = vadd.f32 %v422, %v427
        %v430 = vstv %s359
        %v431 = vmul.f32 %v399, %v430
        %v434 = vunpack.c.l.s4 857870592
        %v435 = vunpack.c.0.s8 %v434
        %v436 = vlaneseq
        %v437 = vshrl.u32 %v436, 7
        %v438 = vsub.s32 %v435, %v437
        %v439 = vrot.slane %v431, %v438
        %v441 = vadd.f32 %v429, %v439
        %v442 = vstv %s361
        %v443 = vmul.f32 %v395, %v442
        %v444 = vstv %s363
        %v445 = vmul.f32 %v397, %v444
        %v447 = vrot.slane %v445, 7
        %v448 = vrot.slane %v447, 2
        %v450 = vadd.f32 %v443, %v448
        %v451 = vstv %s365
        %v452 = vmul.f32 %v399, %v451
        %v455 = vunpack.c.l.s4 857870592
        %v456 = vunpack.c.0.s8 %v455
        %v457 = vlaneseq
        %v458 = vshrl.u32 %v457, 7
        %v459 = vsub.s32 %v456, %v458
        %v460 = vrot.slane %v452, %v459
        %v462 = vadd.f32 %v450, %v460
        %v464 = vlaneseq
        %v465 = vshrl.u32 %v464, 7
        %v466 = vsub.s32 0, %v465
        %v467 = vrot.slane %v420, %v466
        %v468 = vlaneseq
        %v469 = vshrl.u32 %v468, 7
        %v470 = vsub.s32 2, %v469
        %v471 = vrot.slane %v420, %v470
        %v475 = vlaneseq
        %v476 = vshrl.u32 %v475, 7
        %v477 = vsub.s32 0, %v476
        %v478 = vrot.slane %v441, %v477
        %v479 = vlaneseq
        %v480 = vshrl.u32 %v479, 7
        %v481 = vsub.s32 2, %v480
        %v482 = vrot.slane %v441, %v481
        %v486 = vlaneseq
        %v487 = vshrl.u32 %v486, 7
        %v488 = vsub.s32 0, %v487
        %v489 = vrot.slane %v462, %v488
        %v490 = vlaneseq
        %v491 = vshrl.u32 %v490, 7
        %v492 = vsub.s32 2, %v491
        %v493 = vrot.slane %v462, %v492
        %vm496 = vcmask 1040384
        %v497 = vsel %vm496, %v467, %v478
        %v498 = vsel %vm496, %v471, %v482
        %vm499 = vcmask 1041408
        %v500 = vsel %vm499, %v497, %v489
        %v501 = vsel %vm499, %v498, %v493
        %v504 = vcombine.low %v500, %v501
        %506 = vst [vmem:[%s303] sm:$0x77] %v504
        %vm507 = vcmp.gt.f32.partialorder %v373, 0.0
        %vm508 = vcmp.gt.f32.partialorder %v374, 0.5
        %vm509 = vmand %vm507, %vm508
        %v510 = vsel %vm509, 1, 0
        %v511 = vcvt.s32.f32 %v510
        %v512 = vlaneseq
        %vm513 = vcmp.ge.s32.totalorder %v512, 0
        %vm514 = vcmp.lt.s32.totalorder %v512, 256
        %vm515 = vmand %vm513, %vm514
        %516 = vst.msk [vmem:[%s310] sm:$0x3] %vm515, %v511
        %s517 = sand.u32 %s150, 1
        %s518 = scalar_lea.sflag [#allocation4], %s517
        %s519 = sand.u32 %s150, 1
        %s520 = smul.addr %s519, 8
        %s521 = scalar_lea.vmem [#allocation7], %s520
        %s522 = sand.u32 %s178, 1
        %s523 = scalar_lea.sflag [#allocation9], %s522
        %s524 = sand.u32 %s178, 1
        %s525 = smul.addr %s524, 2
        %s526 = scalar_lea.vmem [#allocation8], %s525
        // Predicated region
        $region45: #{tpu_custom_call.1} parent=35 // pred_check
          %p527 = pneg %p160
        $region46: #{tpu_custom_call.1} parent=35 // pred_check_branch
          %529 = sbr.rel (%p527) target = $region48
        $region47: #{tpu_custom_call.1} parent=35 // pred_region
          %s530 = sadd.s32 %s29, %s30
          %s531 = smul.u32 2, %s530
          %s533 = ssub.s32 128, 128
          %534 = vsyncadd %s518, %s533
          %s535 = smul.addr %s531, 64
          %s536 = scalar_lea.hbm %s4, %s535
          %s538 = sshll.u32 %s521, 4
          %s539 = int_to_ptr.vmem [resolvable:$true] %s538
          %541 = dma.vmem_to_hbm [thread:$0]  %s539, 128, %s536, %s518
        $region48: #{tpu_custom_call.1} parent=35 // pred_fallthru
          _
        // Predicated region
        $region49: #{tpu_custom_call.1} parent=35 // pred_check
          %p542 = pneg %p188
        $region50: #{tpu_custom_call.1} parent=35 // pred_check_branch
          %544 = sbr.rel (%p542) target = $region52
        $region51: #{tpu_custom_call.1} parent=35 // pred_region
          %s545 = sadd.s32 %s29, %s30
          %s546 = smul.u32 2, %s545
          %s548 = ssub.s32 32, 32
          %549 = vsyncadd %s523, %s548
          %s550 = smul.addr %s546, 16
          %s551 = scalar_lea.hbm %s5, %s550
          %s553 = sshll.u32 %s526, 4
          %s554 = int_to_ptr.vmem [resolvable:$true] %s553
          %556 = dma.vmem_to_hbm [thread:$0]  %s554, 32, %s551, %s523
        $region52: #{tpu_custom_call.1} parent=35 // pred_fallthru
          _
      $region36: #{tpu_custom_call.1} parent=5 // pred_fallthru
        _
      %p557 = scmp.le.s32.totalorder 2, %s20
      // Predicated region
      $region53: #{tpu_custom_call.1} parent=5 // pred_check
        %p558 = pneg %p557
      $region54: #{tpu_custom_call.1} parent=5 // pred_check_branch
        %560 = sbr.rel (%p558) target = $region56
      $region55: #{tpu_custom_call.1} parent=5 // pred_region
        %s561 = ssub.s32 %s20, 2
        // Predicated region
        $region57: #{tpu_custom_call.1} parent=55 // pred_check
          %p562 = pneg %p166
        $region58: #{tpu_custom_call.1} parent=55 // pred_check_branch
          %564 = sbr.rel (%p562) target = $region60
        $region59: #{tpu_custom_call.1} parent=55 // pred_region
          %s565 = sand.u32 %s151, 1
          %s566 = scalar_lea.sflag [#allocation4], %s565
          %s567 = sand.u32 %s151, 1
          %s568 = smul.addr %s567, 8
          %s569 = scalar_lea.vmem [#allocation7], %s568
          %570 = dma.done %s566, 128
        $region60: #{tpu_custom_call.1} parent=55 // pred_fallthru
          _
        // Predicated region
        $region61: #{tpu_custom_call.1} parent=55 // pred_check
          %p571 = pneg %p194
        $region62: #{tpu_custom_call.1} parent=55 // pred_check_branch
          %573 = sbr.rel (%p571) target = $region64
        $region63: #{tpu_custom_call.1} parent=55 // pred_region
          %s574 = sand.u32 %s179, 1
          %s575 = scalar_lea.sflag [#allocation9], %s574
          %s576 = sand.u32 %s179, 1
          %s577 = smul.addr %s576, 2
          %s578 = scalar_lea.vmem [#allocation8], %s577
          %579 = dma.done %s575, 32
        $region64: #{tpu_custom_call.1} parent=55 // pred_fallthru
          _
      $region56: #{tpu_custom_call.1} parent=5 // pred_fallthru
        _
    $region6: #{tpu_custom_call.1} parent=1 // loop_footer
      %s24 = sadd.s32 1, %s20
    $region7: #{tpu_custom_call.1} parent=1 // loop_footer_branch
      %19 = sbr.rel target = $region3
    $region8: #{tpu_custom_call.1} parent=1 // loop_exit
      _
    %580 = vsyncpa [#allocation3], 1
    %s581 = scalar_lea.sflag [#allocation3], 1
    %582 = vsyncpa %s581, 1
    %583 = vsyncpa [#allocation4], 1
    %s584 = scalar_lea.sflag [#allocation4], 1
    %585 = vsyncpa %s584, 1
    %586 = vsyncpa [#allocation9], 1
    %s587 = scalar_lea.sflag [#allocation9], 1
    %588 = vsyncpa %s587, 1
    %589 = vsyncpa [#allocation5], 1
    %s590 = scalar_lea.sflag [#allocation5], 1
    %591 = vsyncpa %s590, 1

</llo_original>
